<compile_context>
chip_gen: v7x
topology: tpu7x:2x2x1
jax: 0.10.0
libtpu: 0.0.40
codegen_flags: <defaults>
</compile_context>

<pallas_src>
import numpy as np
import jax
import jax.numpy as jnp
from jax.experimental import pallas as pl
from jax.experimental.pallas import tpu as pltpu


# ---------------------------------------------------------------------------
# PyTorch-compatible bilinear (align_corners=False) 1-D interpolation matrix.
# ---------------------------------------------------------------------------
def _interp_matrix(out_size: int, in_size: int) -> np.ndarray:
    W = np.zeros((out_size, in_size), dtype=np.float32)
    if out_size == in_size:
        np.fill_diagonal(W, 1.0)
        return W
    scale = in_size / out_size
    for o in range(out_size):
        src = (o + 0.5) * scale - 0.5
        if src < 0.0:
            src = 0.0
        i0 = int(np.floor(src))
        i0 = min(i0, in_size - 1)
        i1 = min(i0 + 1, in_size - 1)
        frac = src - i0
        W[o, i0] += 1.0 - frac
        W[o, i1] += frac
    return W


# ---------------------------------------------------------------------------
# Kernel: whole decoder forward for one batch tile.  All activations stay 2-D,
# lane-dense.  Only 4 dependent MXU matmuls on the critical path.
# ---------------------------------------------------------------------------
def _decoder_kernel(x_ref,
                    ff1w_ref, ff1b_ref,
                    aw_ref, ab_ref,
                    o1w_ref, o1b_ref,
                    wt_ref, bt_ref,
                    out_ref):
    wdt = ff1w_ref.dtype                      # compute dtype (f32 by default)
    x = x_ref[...]                            # (tb, dim) f32

    # (1) ff1 + ReLU
    h = jnp.maximum(
        jnp.dot(x.astype(wdt), ff1w_ref[...],
                preferred_element_type=jnp.float32) + ff1b_ref[...],
        0.0)                                  # (tb, dim) f32

    # (2) fused ff2 + encoding residual + scale:  p = [h | x] @ A + bA   (K = 2*dim)
    hx = jnp.concatenate([h, x], axis=-1).astype(wdt)        # (tb, 2*dim)
    p = (jnp.dot(hx, aw_ref[...], preferred_element_type=jnp.float32)
         + ab_ref[...])                       # (tb, E) f32

    # (3) output_residual hidden layer via block-diagonal kron(I_iV, o1w)
    h2 = jnp.maximum(
        jnp.dot(p.astype(wdt), o1w_ref[...],
                preferred_element_type=jnp.float32) + o1b_ref[...],
        0.0)                                  # (tb, E) f32

    # (4) fused tail (second FF layer + residual + bilinear resize), lane-padded N
    hp = jnp.concatenate([h2, p], axis=-1).astype(wt_ref.dtype)   # (tb, 2E)
    out = (jnp.dot(hp, wt_ref[...], preferred_element_type=jnp.float32)
           + bt_ref[...])                     # (tb, F_pad) f32
    out_ref[...] = out.astype(out_ref.dtype)


# ---------------------------------------------------------------------------
# Wrapper: weight folding (fuse ff2+scale, block-diag kron, resize matrix,
# tail fusion, lane padding) + pallas_call.
# ---------------------------------------------------------------------------
def radar_transformer_decoder(x, params, *, iV, iR, Vout, Rout,
                              compute_dtype=jnp.float32, tb=None):
    B, dim = x.shape
    E = iV * iR
    F = Vout * Rout
    F_pad = int(pl.cdiv(F, 128)) * 128
    f32 = jnp.float32

    # --- batch tiling: single grid step on single-TC chips (v5e/v6e); two
    #     "parallel" steps only when the chip looks like v7x (2 TCs/chip). ---
    single_buffer_weights = False
    if tb is None:
        tb = B
        try:
            kind = jax.devices()[0].device_kind.lower()
        except Exception:
            kind = ""
        if "v7" in kind and B % 2 == 0 and (B // 2) % 8 == 0:
            tb = B // 2
            single_buffer_weights = True
    assert B % tb == 0, "batch must be divisible by the batch tile"
    assert tb == B or tb % 8 == 0, "batch tile must be a multiple of 8"

    # --- weight folding (plain JAX, done once outside the kernel, in f32) ---
    with jax.default_matmul_precision("highest"):
        ff1w = params["ff1w"].astype(f32)
        ff1b = params["ff1b"].astype(f32)
        sw = params["sw"].astype(f32)
        # fused ff2 + residual + scale:  p = [h | x] @ A + bA
        A = jnp.concatenate([params["ff2w"].astype(f32) @ sw, sw], axis=0)  # (2*dim, E)
        bA = params["ff2b"].astype(f32) @ sw + params["sb"].astype(f32)     # (1, E)
        # block-diagonal output_residual weights (Linear acts on the iR axis)
        eye_v = jnp.eye(iV, dtype=f32)
        o1w_blk = jnp.kron(eye_v, params["o1w"].astype(f32))               # (E, E)
        o2w_blk = jnp.kron(eye_v, params["o2w"].astype(f32))               # (E, E)
        o1b_blk = jnp.tile(params["o1b"].astype(f32), (1, iV))             # (1, E)
        o2b_blk = jnp.tile(params["o2b"].astype(f32), (1, iV))             # (1, E)
        # bilinear resize as one matrix; fold the second FF layer through it
        M = jnp.kron(params["wv"].astype(f32), params["wr"].astype(f32)).T  # (E, F)
        Wtail = jnp.concatenate([o2w_blk @ M, M], axis=0)                  # (2E, F)
        btail = o2b_blk @ M                                                # (1, F)
    # lane-pad the output dim to a multiple of 128 -> unmasked vst stores
    Wtail = jnp.pad(Wtail, ((0, 0), (0, F_pad - F)))
    btail = jnp.pad(btail, ((0, 0), (0, F_pad - F)))

    cdt = jnp.dtype(compute_dtype)
    weights = [ff1w.astype(cdt), ff1b,
               A.astype(cdt), bA,
               o1w_blk.astype(cdt), o1b_blk,
               Wtail.astype(cdt), btail]

    def rep_spec(a):
        nd = a.ndim
        idx = lambda b, _nd=nd: (0,) * _nd
        if single_buffer_weights:
            # Block index never changes: no need to double-buffer the densified
            # kron weights on v7x (64 MiB VMEM).  Fall back gracefully if the
            # installed JAX doesn't accept pipeline_mode.
            try:
                return pl.BlockSpec(a.shape, idx, pipeline_mode=pl.Buffered(1))
            except (TypeError, ValueError):
                pass
        return pl.BlockSpec(a.shape, idx)

    in_specs = ([pl.BlockSpec((tb, dim), lambda b: (b, 0))]
                + [rep_spec(a) for a in weights])
    out_spec = pl.BlockSpec((tb, F_pad), lambda b: (b, 0))   # lane-dense output

    flops = 2 * B * (dim * dim + 2 * dim * E + E * E + 2 * E * F_pad)
    bytes_accessed = (int(x.size) * 4
                      + sum(int(a.size) * a.dtype.itemsize for a in weights)
                      + B * F_pad * 4)

    out2d = pl.pallas_call(
        _decoder_kernel,
        out_shape=jax.ShapeDtypeStruct((B, F_pad), jnp.float32),
        grid_spec=pltpu.PrefetchScalarGridSpec(
            num_scalar_prefetch=0,
            grid=(B // tb,),
            in_specs=in_specs,
            out_specs=out_spec,
        ),
        compiler_params=pltpu.CompilerParams(
            dimension_semantics=("parallel",)),
        cost_estimate=pl.CostEstimate(
            flops=flops, transcendentals=0, bytes_accessed=bytes_accessed),
    )(x.astype(f32), *weights)

    # strip lane padding, then reshape to (B, Vout, Rout) outside the kernel
    return out2d[:, :F].reshape(B, Vout, Rout)


# ---------------------------------------------------------------------------
# Pure-JAX f32 reference (mirrors the PyTorch forward, highest matmul precision).
# ---------------------------------------------------------------------------
def _reference(x, p, *, iV, iR):
    with jax.default_matmul_precision("highest"):
        h = jnp.maximum(x @ p["ff1w"] + p["ff1b"], 0.0)
        enc = h @ p["ff2w"] + p["ff2b"] + x
        y = enc @ p["sw"] + p["sb"]
        pr = y.reshape(-1, iV, iR)
        h2 = jnp.maximum(jnp.einsum('bvr,rs->bvs', pr, p["o1w"]) + p["o1b"], 0.0)
        p2 = jnp.einsum('bvr,rs->bvs', h2, p["o2w"]) + p["o2b"] + pr
        t = jnp.einsum('vi,bir->bvr', p["wv"], p2)
        return jnp.einsum('bvr,or->bvo', t, p["wr"])


if __name__ == "__main__":
    # Small, module-consistent shapes.
    B, dim = 64, 32                 # batch of CLS encodings, hidden dim
    iV, iR = 4, 16                  # internal_num_viewing_geometries / _range_gates
    Vout, Rout = 6, 24              # num_viewing_geometries, num_range_gates
    E = iV * iR

    key = jax.random.PRNGKey(0)
    ks = jax.random.split(key, 16)

    def lin(k, fan_in, shape):
        bound = 1.0 / np.sqrt(fan_in)
        return jax.random.uniform(k, shape, jnp.float32, -bound, bound)

    # Weights stored already transposed to (in, out) so the math is x @ W + b.
    params = dict(
        ff1w=lin(ks[0], dim, (dim, dim)), ff1b=lin(ks[1], dim, (1, dim)),
        ff2w=lin(ks[2], dim, (dim, dim)), ff2b=lin(ks[3], dim, (1, dim)),
        sw=lin(ks[4], dim, (dim, E)),     sb=lin(ks[5], dim, (1, E)),
        o1w=lin(ks[6], iR, (iR, iR)),     o1b=lin(ks[7], iR, (1, iR)),
        o2w=lin(ks[8], iR, (iR, iR)),     o2b=lin(ks[9], iR, (1, iR)),
        wv=jnp.asarray(_interp_matrix(Vout, iV)),   # (Vout, iV)
        wr=jnp.asarray(_interp_matrix(Rout, iR)),   # (Rout, iR)
    )

    x = jax.random.normal(ks[10], (B, dim), jnp.float32)

    out = radar_transformer_decoder(x, params, iV=iV, iR=iR, Vout=Vout, Rout=Rout)
    out = jax.block_until_ready(out)
    assert out.shape == (B, Vout, Rout)

    ref = jax.block_until_ready(_reference(x, params, iV=iV, iR=iR))

    # f32 compute path (default): remaining error comes from the weight-folding
    # reassociation and MXU pass rounding; tolerance tightened from 5% to 2% of
    # the global max (typical observed error is orders of magnitude smaller).
    ref_np = np.asarray(ref)
    out_np = np.asarray(out)
    scale = np.max(np.abs(ref_np)) + 1e-6
    max_err = np.max(np.abs(out_np - ref_np))
    assert max_err <= 0.02 * scale, f"error too large: {max_err} vs scale {scale}"

    print("KERNEL_OK")
</pallas_src>

<mosaic_0001>
module attributes {stable_mosaic.version = 11 : i64} {
  func.func @_decoder_kernel(%arg0: i32, %arg1: memref<64x32xf32, #tpu.memory_space<vmem>>, %arg2: memref<32x32xf32, #tpu.memory_space<vmem>>, %arg3: memref<1x32xf32, #tpu.memory_space<vmem>>, %arg4: memref<64x64xf32, #tpu.memory_space<vmem>>, %arg5: memref<1x64xf32, #tpu.memory_space<vmem>>, %arg6: memref<64x64xf32, #tpu.memory_space<vmem>>, %arg7: memref<1x64xf32, #tpu.memory_space<vmem>>, %arg8: memref<128x256xf32, #tpu.memory_space<vmem>>, %arg9: memref<1x256xf32, #tpu.memory_space<vmem>>, %arg10: memref<64x256xf32, #tpu.memory_space<vmem>>) attributes {dimension_semantics = [#tpu.dimension_semantics<parallel>], iteration_bounds = array<i64: 1>, scalar_prefetch = 0 : i64, scratch_operands = 0 : i64, tpu.core_type = #tpu.core_type<tc>, window_params = [{transform_indices = @transform_0, window_bounds = array<i64: 64, 32>}, {pipeline_mode = #tpu.pipeline_mode<synchronous>, transform_indices = @transform_1, window_bounds = array<i64: 32, 32>}, {pipeline_mode = #tpu.pipeline_mode<synchronous>, transform_indices = @transform_2, window_bounds = array<i64: 1, 32>}, {pipeline_mode = #tpu.pipeline_mode<synchronous>, transform_indices = @transform_3, window_bounds = array<i64: 64, 64>}, {pipeline_mode = #tpu.pipeline_mode<synchronous>, transform_indices = @transform_4, window_bounds = array<i64: 1, 64>}, {pipeline_mode = #tpu.pipeline_mode<synchronous>, transform_indices = @transform_5, window_bounds = array<i64: 64, 64>}, {pipeline_mode = #tpu.pipeline_mode<synchronous>, transform_indices = @transform_6, window_bounds = array<i64: 1, 64>}, {pipeline_mode = #tpu.pipeline_mode<synchronous>, transform_indices = @transform_7, window_bounds = array<i64: 128, 256>}, {pipeline_mode = #tpu.pipeline_mode<synchronous>, transform_indices = @transform_8, window_bounds = array<i64: 1, 256>}, {transform_indices = @transform_9, window_bounds = array<i64: 64, 256>}]} {
    %c0 = arith.constant 0 : index
    %c0_0 = arith.constant 0 : index
    %0 = vector.load %arg1[%c0, %c0_0] : memref<64x32xf32, #tpu.memory_space<vmem>>, vector<64x32xf32>
    %c0_1 = arith.constant 0 : index
    %c0_2 = arith.constant 0 : index
    %1 = vector.load %arg2[%c0_1, %c0_2] : memref<32x32xf32, #tpu.memory_space<vmem>>, vector<32x32xf32>
    %cst = arith.constant dense<0.000000e+00> : vector<64x32xf32>
    %2 = tpu.matmul %0, %1, %cst {dimension_numbers = #tpu.dot_dimension_numbers<[1], [0], [0], [1], [0, 0, 1, 1], [], []>} : vector<64x32xf32>, vector<32x32xf32>, vector<64x32xf32> -> vector<64x32xf32>
    %c0_3 = arith.constant 0 : index
    %c0_4 = arith.constant 0 : index
    %3 = vector.load %arg3[%c0_3, %c0_4] : memref<1x32xf32, #tpu.memory_space<vmem>>, vector<1x32xf32>
    %4 = vector.broadcast %3 : vector<1x32xf32> to vector<64x32xf32>
    %5 = arith.addf %2, %4 : vector<64x32xf32>
    %cst_5 = arith.constant 0.000000e+00 : f32
    %6 = vector.broadcast %cst_5 : f32 to vector<64x32xf32>
    %7 = arith.maximumf %5, %6 : vector<64x32xf32>
    %8 = tpu.concatenate %7, %0 in 1 : vector<64x32xf32>, vector<64x32xf32> -> vector<64x64xf32>
    %c0_6 = arith.constant 0 : index
    %c0_7 = arith.constant 0 : index
    %9 = vector.load %arg4[%c0_6, %c0_7] : memref<64x64xf32, #tpu.memory_space<vmem>>, vector<64x64xf32>
    %cst_8 = arith.constant dense<0.000000e+00> : vector<64x64xf32>
    %10 = tpu.matmul %8, %9, %cst_8 {dimension_numbers = #tpu.dot_dimension_numbers<[1], [0], [0], [1], [0, 0, 1, 1], [], []>} : vector<64x64xf32>, vector<64x64xf32>, vector<64x64xf32> -> vector<64x64xf32>
    %c0_9 = arith.constant 0 : index
    %c0_10 = arith.constant 0 : index
    %11 = vector.load %arg5[%c0_9, %c0_10] : memref<1x64xf32, #tpu.memory_space<vmem>>, vector<1x64xf32>
    %12 = vector.broadcast %11 : vector<1x64xf32> to vector<64x64xf32>
    %13 = arith.addf %10, %12 : vector<64x64xf32>
    %c0_11 = arith.constant 0 : index
    %c0_12 = arith.constant 0 : index
    %14 = vector.load %arg6[%c0_11, %c0_12] : memref<64x64xf32, #tpu.memory_space<vmem>>, vector<64x64xf32>
    %cst_13 = arith.constant dense<0.000000e+00> : vector<64x64xf32>
    %15 = tpu.matmul %13, %14, %cst_13 {dimension_numbers = #tpu.dot_dimension_numbers<[1], [0], [0], [1], [0, 0, 1, 1], [], []>} : vector<64x64xf32>, vector<64x64xf32>, vector<64x64xf32> -> vector<64x64xf32>
    %c0_14 = arith.constant 0 : index
    %c0_15 = arith.constant 0 : index
    %16 = vector.load %arg7[%c0_14, %c0_15] : memref<1x64xf32, #tpu.memory_space<vmem>>, vector<1x64xf32>
    %17 = vector.broadcast %16 : vector<1x64xf32> to vector<64x64xf32>
    %18 = arith.addf %15, %17 : vector<64x64xf32>
    %cst_16 = arith.constant 0.000000e+00 : f32
    %19 = vector.broadcast %cst_16 : f32 to vector<64x64xf32>
    %20 = arith.maximumf %18, %19 : vector<64x64xf32>
    %21 = tpu.concatenate %20, %13 in 1 : vector<64x64xf32>, vector<64x64xf32> -> vector<64x128xf32>
    %c0_17 = arith.constant 0 : index
    %c0_18 = arith.constant 0 : index
    %22 = vector.load %arg8[%c0_17, %c0_18] : memref<128x256xf32, #tpu.memory_space<vmem>>, vector<128x256xf32>
    %cst_19 = arith.constant dense<0.000000e+00> : vector<64x256xf32>
    %23 = tpu.matmul %21, %22, %cst_19 {dimension_numbers = #tpu.dot_dimension_numbers<[1], [0], [0], [1], [0, 0, 1, 1], [], []>} : vector<64x128xf32>, vector<128x256xf32>, vector<64x256xf32> -> vector<64x256xf32>
    %c0_20 = arith.constant 0 : index
    %c0_21 = arith.constant 0 : index
    %24 = vector.load %arg9[%c0_20, %c0_21] : memref<1x256xf32, #tpu.memory_space<vmem>>, vector<1x256xf32>
    %25 = vector.broadcast %24 : vector<1x256xf32> to vector<64x256xf32>
    %26 = arith.addf %23, %25 : vector<64x256xf32>
    %c0_22 = arith.constant 0 : index
    %c0_23 = arith.constant 0 : index
    %27 = vector.load %arg10[%c0_22, %c0_23] : memref<64x256xf32, #tpu.memory_space<vmem>>, vector<64x256xf32>
    tpu.vector_store %arg10[%c0_22, %c0_23], %26 {strides = array<i32>} : memref<64x256xf32, #tpu.memory_space<vmem>>, vector<64x256xf32>,
    return
  }
  func.func @transform_0(%arg0: i32) -> (i32, i32) {
    %c0_i32 = arith.constant 0 : i32
    %c0_i32_0 = arith.constant 0 : i32
    return %arg0, %c0_i32 : i32, i32
  }
  func.func @transform_1(%arg0: i32) -> (i32, i32) {
    %c0_i32 = arith.constant 0 : i32
    %c0_i32_0 = arith.constant 0 : i32
    %c0_i32_1 = arith.constant 0 : i32
    return %c0_i32, %c0_i32_0 : i32, i32
  }
  func.func @transform_2(%arg0: i32) -> (i32, i32) {
    %c0_i32 = arith.constant 0 : i32
    %c0_i32_0 = arith.constant 0 : i32
    %c0_i32_1 = arith.constant 0 : i32
    return %c0_i32, %c0_i32_0 : i32, i32
  }
  func.func @transform_3(%arg0: i32) -> (i32, i32) {
    %c0_i32 = arith.constant 0 : i32
    %c0_i32_0 = arith.constant 0 : i32
    %c0_i32_1 = arith.constant 0 : i32
    return %c0_i32, %c0_i32_0 : i32, i32
  }
  func.func @transform_4(%arg0: i32) -> (i32, i32) {
    %c0_i32 = arith.constant 0 : i32
    %c0_i32_0 = arith.constant 0 : i32
    %c0_i32_1 = arith.constant 0 : i32
    return %c0_i32, %c0_i32_0 : i32, i32
  }
  func.func @transform_5(%arg0: i32) -> (i32, i32) {
    %c0_i32 = arith.constant 0 : i32
    %c0_i32_0 = arith.constant 0 : i32
    %c0_i32_1 = arith.constant 0 : i32
    return %c0_i32, %c0_i32_0 : i32, i32
  }
  func.func @transform_6(%arg0: i32) -> (i32, i32) {
    %c0_i32 = arith.constant 0 : i32
    %c0_i32_0 = arith.constant 0 : i32
    %c0_i32_1 = arith.constant 0 : i32
    return %c0_i32, %c0_i32_0 : i32, i32
  }
  func.func @transform_7(%arg0: i32) -> (i32, i32) {
    %c0_i32 = arith.constant 0 : i32
    %c0_i32_0 = arith.constant 0 : i32
    %c0_i32_1 = arith.constant 0 : i32
    return %c0_i32, %c0_i32_0 : i32, i32
  }
  func.func @transform_8(%arg0: i32) -> (i32, i32) {
    %c0_i32 = arith.constant 0 : i32
    %c0_i32_0 = arith.constant 0 : i32
    %c0_i32_1 = arith.constant 0 : i32
    return %c0_i32, %c0_i32_0 : i32, i32
  }
  func.func @transform_9(%arg0: i32) -> (i32, i32) {
    %c0_i32 = arith.constant 0 : i32
    %c0_i32_0 = arith.constant 0 : i32
    return %arg0, %c0_i32 : i32, i32
  }
}

</mosaic_0001>

<llo_original>
// kernel: tpu_custom_call.1
$region0: #{tpu_custom_call.1}
  #allocation0 [shape = 'u32[]', space=smem, size = 0x4, offset = 0x4, fixed_abs, tag = 'smem constant byte address 0x4 - core index']
  #allocation1 [shape = 'u32[144,128]{1,0:T(1,128)}', space=vmem, size = 0x12000, scoped, tag = 'internal scratch']
  %s0 = inlined_call_operand.vmem [shape: f32[64,32], index: 0, kind: input, shape index: {}]
  %s1 = inlined_call_operand.vmem [shape: f32[32,32], index: 1, kind: input, shape index: {}]
  %s2 = inlined_call_operand.vmem [shape: f32[1,32], index: 2, kind: input, shape index: {}]
  %s3 = inlined_call_operand.vmem [shape: f32[64,64], index: 3, kind: input, shape index: {}]
  %s4 = inlined_call_operand.vmem [shape: f32[1,64], index: 4, kind: input, shape index: {}]
  %s5 = inlined_call_operand.hbm [shape: f32[64,64], index: 5, kind: input, shape index: {}]
  %s6 = inlined_call_operand.vmem [shape: f32[1,64], index: 6, kind: input, shape index: {}]
  %s7 = inlined_call_operand.hbm [shape: f32[128,256], index: 7, kind: input, shape index: {}]
  %s8 = inlined_call_operand.vmem [shape: f32[1,256], index: 8, kind: input, shape index: {}]
  %s9 = inlined_call_operand.hbm [shape: f32[64,256], index: 9, kind: output, shape index: {}]
  %s10 = sld [smem:[#allocation0]]
  $region54: #{tpu_custom_call.1} parent=0
    _
  %s12 = ssub.s32 1, %s10
  %s13 = scalar_select 0, %s12, %s10
  $region1: #{tpu_custom_call.1} parent=0
    #allocation2 [shape = 'u8[32768]{0}', space=vmem, size = 0x8000, scoped, tag = 'input window, operand 5, single buffered']
    #allocation3 [shape = 's32[1]{0}', space=sflag, size = 0x4, scoped, tag = 'scoped memory for tpu_custom_call.1']
    #allocation4 [shape = 's32[1]{0}', space=sflag, size = 0x4, scoped, tag = 'scoped memory for tpu_custom_call.1']
    #allocation5 [shape = 'u8[131072]{0}', space=vmem, size = 0x20000, scoped, tag = 'input window, operand 7, single buffered']
    #allocation6 [shape = 's32[1]{0}', space=sflag, size = 0x4, scoped, tag = 'scoped memory for tpu_custom_call.1']
    #allocation7 [shape = 'u8[65536]{0}', space=vmem, size = 0x10000, scoped, tag = 'output window, operand 0, single buffered']
    %14 = vsyncpa [#allocation3], 0
    %15 = vsyncpa [#allocation6], 0
    %16 = vsyncpa [#allocation4], 0
    // Predicated region
    $region2: #{tpu_custom_call.1} parent=1 // pred_check
      _
    $region3: #{tpu_custom_call.1} parent=1 // pred_check_branch
      %18 = sbr.rel (0) target = $region5
    $region4: #{tpu_custom_call.1} parent=1 // pred_region
      _
    $region5: #{tpu_custom_call.1} parent=1 // pred_fallthru
      _
    // Predicated region
    $region6: #{tpu_custom_call.1} parent=1 // pred_check
      _
    $region7: #{tpu_custom_call.1} parent=1 // pred_check_branch
      %20 = sbr.rel (0) target = $region9
    $region8: #{tpu_custom_call.1} parent=1 // pred_region
      _
    $region9: #{tpu_custom_call.1} parent=1 // pred_fallthru
      _
    // Predicated region
    $region10: #{tpu_custom_call.1} parent=1 // pred_check
      _
    $region11: #{tpu_custom_call.1} parent=1 // pred_check_branch
      %22 = sbr.rel (0) target = $region13
    $region12: #{tpu_custom_call.1} parent=1 // pred_region
      _
    $region13: #{tpu_custom_call.1} parent=1 // pred_fallthru
      _
    // Predicated region
    $region14: #{tpu_custom_call.1} parent=1 // pred_check
      _
    $region15: #{tpu_custom_call.1} parent=1 // pred_check_branch
      %24 = sbr.rel (0) target = $region17
    $region16: #{tpu_custom_call.1} parent=1 // pred_region
      _
    $region17: #{tpu_custom_call.1} parent=1 // pred_fallthru
      _
    // Predicated region
    $region18: #{tpu_custom_call.1} parent=1 // pred_check
      _
    $region19: #{tpu_custom_call.1} parent=1 // pred_check_branch
      %26 = sbr.rel (0) target = $region21
    $region20: #{tpu_custom_call.1} parent=1 // pred_region
      _
    $region21: #{tpu_custom_call.1} parent=1 // pred_fallthru
      _
    // Predicated region
    $region22: #{tpu_custom_call.1} parent=1 // pred_check
      _
    $region23: #{tpu_custom_call.1} parent=1 // pred_check_branch
      %28 = sbr.rel (0) target = $region25
    $region24: #{tpu_custom_call.1} parent=1 // pred_region
      %s30 = ssub.s32 1024, 1024
      %31 = vsyncadd [#allocation3], %s30
      %s32 = sshll.u32 [#allocation2], 4
      %s33 = int_to_ptr.vmem [resolvable:$true] %s32
      %38 = dma.hbm_to_vmem [thread:$0]  %s5, 1024, %s33, [#allocation3], 128, 128, 8
    $region25: #{tpu_custom_call.1} parent=1 // pred_fallthru
      _
    // Predicated region
    $region26: #{tpu_custom_call.1} parent=1 // pred_check
      _
    $region27: #{tpu_custom_call.1} parent=1 // pred_check_branch
      %40 = sbr.rel (0) target = $region29
    $region28: #{tpu_custom_call.1} parent=1 // pred_region
      _
    $region29: #{tpu_custom_call.1} parent=1 // pred_fallthru
      _
    // Predicated region
    $region30: #{tpu_custom_call.1} parent=1 // pred_check
      _
    $region31: #{tpu_custom_call.1} parent=1 // pred_check_branch
      %42 = sbr.rel (0) target = $region33
    $region32: #{tpu_custom_call.1} parent=1 // pred_region
      %s44 = ssub.s32 4096, 4096
      %45 = vsyncadd [#allocation6], %s44
      %s46 = sshll.u32 [#allocation5], 4
      %s47 = int_to_ptr.vmem [resolvable:$true] %s46
      %52 = dma.hbm_to_vmem [thread:$0]  %s7, 4096, %s47, [#allocation6], 256, 256, 16
    $region33: #{tpu_custom_call.1} parent=1 // pred_fallthru
      _
    // Predicated region
    $region34: #{tpu_custom_call.1} parent=1 // pred_check
      _
    $region35: #{tpu_custom_call.1} parent=1 // pred_check_branch
      %54 = sbr.rel (0) target = $region37
    $region36: #{tpu_custom_call.1} parent=1 // pred_region
      _
    $region37: #{tpu_custom_call.1} parent=1 // pred_fallthru
      _
    // Predicated region
    $region38: #{tpu_custom_call.1} parent=1 // pred_check
      _
    $region39: #{tpu_custom_call.1} parent=1 // pred_check_branch
      %56 = sbr.rel (0) target = $region41
    $region40: #{tpu_custom_call.1} parent=1 // pred_region
      %57 = dma.done [#allocation3], 1024
    $region41: #{tpu_custom_call.1} parent=1 // pred_fallthru
      _
    // Predicated region
    $region42: #{tpu_custom_call.1} parent=1 // pred_check
      _
    $region43: #{tpu_custom_call.1} parent=1 // pred_check_branch
      %59 = sbr.rel (0) target = $region45
    $region44: #{tpu_custom_call.1} parent=1 // pred_region
      %60 = dma.done [#allocation6], 4096
    $region45: #{tpu_custom_call.1} parent=1 // pred_fallthru
      _
    %v61 = vld [vmem:[%s0] sm:$0xff]
    %v62 = vld [vmem:[%s0 + $0x8] sm:$0xff]
    %v63 = vld [vmem:[%s0 + $0x10] sm:$0xff]
    %v64 = vld [vmem:[%s0 + $0x18] sm:$0xff]
    %v65 = vld [vmem:[%s0 + $0x20] sm:$0xff]
    %v66 = vld [vmem:[%s0 + $0x28] sm:$0xff]
    %v67 = vld [vmem:[%s0 + $0x30] sm:$0xff]
    %v68 = vld [vmem:[%s0 + $0x38] sm:$0xff]
    %v69 = vld [vmem:[%s1] sm:$0xff]
    %v70 = vld [vmem:[%s1 + $0x8] sm:$0xff]
    %v71 = vld [vmem:[%s1 + $0x10] sm:$0xff]
    %v72 = vld [vmem:[%s1 + $0x18] sm:$0xff]
    %v73 = vld [vmem:[%s2] sm:$0x1]
    %v75 = vlaneseq
    %v76 = vshrl.u32 %v75, 7
    %v77 = vsub.s32 0, %v76
    %v78 = vrot.slane %v73, %v77
    %vm80 = vcmask 261120
    %v82 = vsel %vm80, %v61, 0
    %v85 = vsel %vm80, %v62, 0
    %v88 = vsel %vm80, %v63, 0
    %v91 = vsel %vm80, %v64, 0
    %v94 = vsel %vm80, %v65, 0
    %v97 = vsel %vm80, %v66, 0
    %v100 = vsel %vm80, %v67, 0
    %v103 = vsel %vm80, %v68, 0
    %105 = vmatprep.subr.mxu0 0.0
    %106 = vmatpush1.msra.mxu0 %v69
    %107 = vmatprep.subr.mxu0 0.0
    %108 = vmatpush1.msra.mxu0 %v70
    %109 = vmatprep.subr.mxu0 0.0
    %110 = vmatpush1.msra.mxu0 %v71
    %111 = vmatprep.subr.mxu0 0.0
    %112 = vmatpush1.msra.mxu0 %v72
    %113 = vmatprep.subr.mxu0 0.0
    %114 = vmatpush1.msra.mxu0 0.0
    %115 = vmatprep.subr.mxu0 0.0
    %116 = vmatpush1.msra.mxu0 0.0
    %117 = vmatprep.subr.mxu0 0.0
    %118 = vmatpush1.msra.mxu0 0.0
    %119 = vmatprep.subr.mxu0 0.0
    %120 = vmatpush1.msra.mxu0 0.0
    %121 = vmatprep.subr.mxu0 0.0
    %122 = vmatpush1.msra.mxu0 0.0
    %123 = vmatprep.subr.mxu0 0.0
    %124 = vmatpush1.msra.mxu0 0.0
    %125 = vmatprep.subr.mxu0 0.0
    %126 = vmatpush1.msra.mxu0 0.0
    %127 = vmatprep.subr.mxu0 0.0
    %128 = vmatpush1.msra.mxu0 0.0
    %129 = vmatprep.subr.mxu0 0.0
    %130 = vmatpush1.msra.mxu0 0.0
    %131 = vmatprep.subr.mxu0 0.0
    %132 = vmatpush1.msra.mxu0 0.0
    %133 = vmatprep.subr.mxu0 0.0
    %134 = vmatpush1.msra.mxu0 0.0
    %135 = vmatprep.subr.mxu0 0.0
    %136 = vmatpush1.msra.mxu0 0.0
    %137 = vmatprep.subr.mxu0 0.0
    %138 = vmatpush1.msra.mxu0 0.0
    %139 = vmatprep.subr.mxu0 0.0
    %140 = vmatpush1.msra.mxu0 0.0
    %141 = vmatprep.subr.mxu0 0.0
    %142 = vmatpush1.msra.mxu0 0.0
    %143 = vmatprep.subr.mxu0 0.0
    %144 = vmatpush1.msra.mxu0 0.0
    %145 = vmatprep.subr.mxu0 0.0
    %146 = vmatpush1.msra.mxu0 0.0
    %147 = vmatprep.subr.mxu0 0.0
    %148 = vmatpush1.msra.mxu0 0.0
    %149 = vmatprep.subr.mxu0 0.0
    %150 = vmatpush1.msra.mxu0 0.0
    %151 = vmatprep.subr.mxu0 0.0
    %152 = vmatpush1.msra.mxu0 0.0
    %153 = vmatprep.subr.mxu0 0.0
    %154 = vmatpush1.msra.mxu0 0.0
    %155 = vmatprep.subr.mxu0 0.0
    %156 = vmatpush1.msra.mxu0 0.0
    %157 = vmatprep.subr.mxu0 0.0
    %158 = vmatpush1.msra.mxu0 0.0
    %159 = vmatprep.subr.mxu0 0.0
    %160 = vmatpush1.msra.mxu0 0.0
    %161 = vmatprep.subr.mxu0 0.0
    %162 = vmatpush1.msra.mxu0 0.0
    %163 = vmatprep.subr.mxu0 0.0
    %164 = vmatpush1.msra.mxu0 0.0
    %165 = vmatprep.subr.mxu0 0.0
    %166 = vmatpush1.msra.mxu0 0.0
    %167 = vmatprep.subr.mxu0 0.0
    %168 = vmatpush1.msra.mxu0 0.0
    %169 = vmatprep.mubr.f32.mxu0 0.0
    %170 = vmatmul.mubr.f32.gmra.mrb[0].mxu0 %v82
    %v171 = vpop.f32.mrb[0].mxu0
    %v172 = vadd.f32 %v78, %v171
    %v173 = vpop.f32.mrb[0].mxu0
    %174 = vmatprep.mubr.f32.mxu0 0.0
    %175 = vmatmul.mubr.f32.gmra.mrb[0].mxu0 %v85
    %v176 = vpop.f32.mrb[0].mxu0
    %v177 = vadd.f32 %v78, %v176
    %v178 = vpop.f32.mrb[0].mxu0
    %179 = vmatprep.mubr.f32.mxu0 0.0
    %180 = vmatmul.mubr.f32.gmra.mrb[0].mxu0 %v88
    %v181 = vpop.f32.mrb[0].mxu0
    %v182 = vadd.f32 %v78, %v181
    %v183 = vpop.f32.mrb[0].mxu0
    %184 = vmatprep.mubr.f32.mxu0 0.0
    %185 = vmatmul.mubr.f32.gmra.mrb[0].mxu0 %v91
    %v186 = vpop.f32.mrb[0].mxu0
    %v187 = vadd.f32 %v78, %v186
    %v188 = vpop.f32.mrb[0].mxu0
    %189 = vmatprep.mubr.f32.mxu0 0.0
    %190 = vmatmul.mubr.f32.gmra.mrb[0].mxu0 %v94
    %v191 = vpop.f32.mrb[0].mxu0
    %v192 = vadd.f32 %v78, %v191
    %v193 = vpop.f32.mrb[0].mxu0
    %194 = vmatprep.mubr.f32.mxu0 0.0
    %195 = vmatmul.mubr.f32.gmra.mrb[0].mxu0 %v97
    %v196 = vpop.f32.mrb[0].mxu0
    %v197 = vadd.f32 %v78, %v196
    %v198 = vpop.f32.mrb[0].mxu0
    %199 = vmatprep.mubr.f32.mxu0 0.0
    %200 = vmatmul.mubr.f32.gmra.mrb[0].mxu0 %v100
    %v201 = vpop.f32.mrb[0].mxu0
    %v202 = vadd.f32 %v78, %v201
    %v203 = vpop.f32.mrb[0].mxu0
    %204 = vmatprep.mubr.f32.mxu0 0.0
    %205 = vmatmul.mubr.f32.gmra.mrb[0].mxu0 %v103
    %v206 = vpop.f32.mrb[0].mxu0
    %v207 = vadd.f32 %v78, %v206
    %v208 = vpop.f32.mrb[0].mxu0
    %209 = vdwg.mxu0
    %v210 = vmax.f32 %v172, 0.0
    %v211 = vmax.f32 %v177, 0.0
    %v212 = vmax.f32 %v182, 0.0
    %v213 = vmax.f32 %v187, 0.0
    %v214 = vmax.f32 %v192, 0.0
    %v215 = vmax.f32 %v197, 0.0
    %v216 = vmax.f32 %v202, 0.0
    %v217 = vmax.f32 %v207, 0.0
    %218 = vrot.lane.b32.xlu0 %v61, 32
    %v219 = vpop.permute.xlu0 %218
    %220 = vrot.lane.b32.xlu0 %v62, 32
    %v221 = vpop.permute.xlu0 %220
    %222 = vrot.lane.b32.xlu0 %v63, 32
    %v223 = vpop.permute.xlu0 %222
    %224 = vrot.lane.b32.xlu0 %v64, 32
    %v225 = vpop.permute.xlu0 %224
    %226 = vrot.lane.b32.xlu0 %v65, 32
    %v227 = vpop.permute.xlu0 %226
    %228 = vrot.lane.b32.xlu0 %v66, 32
    %v229 = vpop.permute.xlu0 %228
    %230 = vrot.lane.b32.xlu0 %v67, 32
    %v231 = vpop.permute.xlu0 %230
    %232 = vrot.lane.b32.xlu0 %v68, 32
    %v233 = vpop.permute.xlu0 %232
    %v242 = vsel %vm80, %v210, %v219
    %v243 = vsel %vm80, %v211, %v221
    %v244 = vsel %vm80, %v212, %v223
    %v245 = vsel %vm80, %v213, %v225
    %v246 = vsel %vm80, %v214, %v227
    %v247 = vsel %vm80, %v215, %v229
    %v248 = vsel %vm80, %v216, %v231
    %v249 = vsel %vm80, %v217, %v233
    %v250 = vld [vmem:[%s3] sm:$0xff]
    %v251 = vld [vmem:[%s3 + $0x8] sm:$0xff]
    %v252 = vld [vmem:[%s3 + $0x10] sm:$0xff]
    %v253 = vld [vmem:[%s3 + $0x18] sm:$0xff]
    %v254 = vld [vmem:[%s3 + $0x20] sm:$0xff]
    %v255 = vld [vmem:[%s3 + $0x28] sm:$0xff]
    %v256 = vld [vmem:[%s3 + $0x30] sm:$0xff]
    %v257 = vld [vmem:[%s3 + $0x38] sm:$0xff]
    %v258 = vld [vmem:[%s4] sm:$0x1]
    %v260 = vlaneseq
    %v261 = vshrl.u32 %v260, 7
    %v262 = vsub.s32 0, %v261
    %v263 = vrot.slane %v258, %v262
    %vm265 = vcmask 523264
    %v267 = vsel %vm265, %v242, 0
    %v270 = vsel %vm265, %v243, 0
    %v273 = vsel %vm265, %v244, 0
    %v276 = vsel %vm265, %v245, 0
    %v279 = vsel %vm265, %v246, 0
    %v282 = vsel %vm265, %v247, 0
    %v285 = vsel %vm265, %v248, 0
    %v288 = vsel %vm265, %v249, 0
    %290 = vmatprep.subr.mxu0 0.0
    %291 = vmatpush1.msra.mxu0 %v250
    %292 = vmatprep.subr.mxu0 0.0
    %293 = vmatpush1.msra.mxu0 %v251
    %294 = vmatprep.subr.mxu0 0.0
    %295 = vmatpush1.msra.mxu0 %v252
    %296 = vmatprep.subr.mxu0 0.0
    %297 = vmatpush1.msra.mxu0 %v253
    %298 = vmatprep.subr.mxu0 0.0
    %299 = vmatpush1.msra.mxu0 %v254
    %300 = vmatprep.subr.mxu0 0.0
    %301 = vmatpush1.msra.mxu0 %v255
    %302 = vmatprep.subr.mxu0 0.0
    %303 = vmatpush1.msra.mxu0 %v256
    %304 = vmatprep.subr.mxu0 0.0
    %305 = vmatpush1.msra.mxu0 %v257
    %306 = vmatprep.subr.mxu0 0.0
    %307 = vmatpush1.msra.mxu0 0.0
    %308 = vmatprep.subr.mxu0 0.0
    %309 = vmatpush1.msra.mxu0 0.0
    %310 = vmatprep.subr.mxu0 0.0
    %311 = vmatpush1.msra.mxu0 0.0
    %312 = vmatprep.subr.mxu0 0.0
    %313 = vmatpush1.msra.mxu0 0.0
    %314 = vmatprep.subr.mxu0 0.0
    %315 = vmatpush1.msra.mxu0 0.0
    %316 = vmatprep.subr.mxu0 0.0
    %317 = vmatpush1.msra.mxu0 0.0
    %318 = vmatprep.subr.mxu0 0.0
    %319 = vmatpush1.msra.mxu0 0.0
    %320 = vmatprep.subr.mxu0 0.0
    %321 = vmatpush1.msra.mxu0 0.0
    %322 = vmatprep.subr.mxu0 0.0
    %323 = vmatpush1.msra.mxu0 0.0
    %324 = vmatprep.subr.mxu0 0.0
    %325 = vmatpush1.msra.mxu0 0.0
    %326 = vmatprep.subr.mxu0 0.0
    %327 = vmatpush1.msra.mxu0 0.0
    %328 = vmatprep.subr.mxu0 0.0
    %329 = vmatpush1.msra.mxu0 0.0
    %330 = vmatprep.subr.mxu0 0.0
    %331 = vmatpush1.msra.mxu0 0.0
    %332 = vmatprep.subr.mxu0 0.0
    %333 = vmatpush1.msra.mxu0 0.0
    %334 = vmatprep.subr.mxu0 0.0
    %335 = vmatpush1.msra.mxu0 0.0
    %336 = vmatprep.subr.mxu0 0.0
    %337 = vmatpush1.msra.mxu0 0.0
    %338 = vmatprep.subr.mxu0 0.0
    %339 = vmatpush1.msra.mxu0 0.0
    %340 = vmatprep.subr.mxu0 0.0
    %341 = vmatpush1.msra.mxu0 0.0
    %342 = vmatprep.subr.mxu0 0.0
    %343 = vmatpush1.msra.mxu0 0.0
    %344 = vmatprep.subr.mxu0 0.0
    %345 = vmatpush1.msra.mxu0 0.0
    %346 = vmatprep.subr.mxu0 0.0
    %347 = vmatpush1.msra.mxu0 0.0
    %348 = vmatprep.subr.mxu0 0.0
    %349 = vmatpush1.msra.mxu0 0.0
    %350 = vmatprep.subr.mxu0 0.0
    %351 = vmatpush1.msra.mxu0 0.0
    %352 = vmatprep.subr.mxu0 0.0
    %353 = vmatpush1.msra.mxu0 0.0
    %354 = vmatprep.mubr.f32.mxu0 0.0
    %355 = vmatmul.mubr.f32.gmra.mrb[0].mxu0 %v267
    %v356 = vpop.f32.mrb[0].mxu0
    %v357 = vadd.f32 %v263, %v356
    %v358 = vpop.f32.mrb[0].mxu0
    %359 = vmatprep.mubr.f32.mxu0 0.0
    %360 = vmatmul.mubr.f32.gmra.mrb[0].mxu0 %v270
    %v361 = vpop.f32.mrb[0].mxu0
    %v362 = vadd.f32 %v263, %v361
    %v363 = vpop.f32.mrb[0].mxu0
    %364 = vmatprep.mubr.f32.mxu0 0.0
    %365 = vmatmul.mubr.f32.gmra.mrb[0].mxu0 %v273
    %v366 = vpop.f32.mrb[0].mxu0
    %v367 = vadd.f32 %v263, %v366
    %v368 = vpop.f32.mrb[0].mxu0
    %369 = vmatprep.mubr.f32.mxu0 0.0
    %370 = vmatmul.mubr.f32.gmra.mrb[0].mxu0 %v276
    %v371 = vpop.f32.mrb[0].mxu0
    %v372 = vadd.f32 %v263, %v371
    %v373 = vpop.f32.mrb[0].mxu0
    %374 = vmatprep.mubr.f32.mxu0 0.0
    %375 = vmatmul.mubr.f32.gmra.mrb[0].mxu0 %v279
    %v376 = vpop.f32.mrb[0].mxu0
    %v377 = vadd.f32 %v263, %v376
    %v378 = vpop.f32.mrb[0].mxu0
    %379 = vmatprep.mubr.f32.mxu0 0.0
    %380 = vmatmul.mubr.f32.gmra.mrb[0].mxu0 %v282
    %v381 = vpop.f32.mrb[0].mxu0
    %v382 = vadd.f32 %v263, %v381
    %v383 = vpop.f32.mrb[0].mxu0
    %384 = vmatprep.mubr.f32.mxu0 0.0
    %385 = vmatmul.mubr.f32.gmra.mrb[0].mxu0 %v285
    %v386 = vpop.f32.mrb[0].mxu0
    %v387 = vadd.f32 %v263, %v386
    %v388 = vpop.f32.mrb[0].mxu0
    %389 = vmatprep.mubr.f32.mxu0 0.0
    %390 = vmatmul.mubr.f32.gmra.mrb[0].mxu0 %v288
    %v391 = vpop.f32.mrb[0].mxu0
    %v392 = vadd.f32 %v263, %v391
    %v393 = vpop.f32.mrb[0].mxu0
    %394 = vdwg.mxu0
    %v395 = vld [vmem:[#allocation2] sm:$0xff]
    %v396 = vld [vmem:[#allocation2 + $0x8] sm:$0xff]
    %v397 = vld [vmem:[#allocation2 + $0x10] sm:$0xff]
    %v398 = vld [vmem:[#allocation2 + $0x18] sm:$0xff]
    %v399 = vld [vmem:[#allocation2 + $0x20] sm:$0xff]
    %v400 = vld [vmem:[#allocation2 + $0x28] sm:$0xff]
    %v401 = vld [vmem:[#allocation2 + $0x30] sm:$0xff]
    %v402 = vld [vmem:[#allocation2 + $0x38] sm:$0xff]
    %v403 = vld [vmem:[%s6] sm:$0x1]
    %v405 = vlaneseq
    %v406 = vshrl.u32 %v405, 7
    %v407 = vsub.s32 0, %v406
    %v408 = vrot.slane %v403, %v407
    %v411 = vsel %vm265, %v357, 0
    %v414 = vsel %vm265, %v362, 0
    %v417 = vsel %vm265, %v367, 0
    %v420 = vsel %vm265, %v372, 0
    %v423 = vsel %vm265, %v377, 0
    %v426 = vsel %vm265, %v382, 0
    %v429 = vsel %vm265, %v387, 0
    %v432 = vsel %vm265, %v392, 0
    %434 = vmatprep.subr.mxu0 0.0
    %435 = vmatpush1.msra.mxu0 %v395
    %436 = vmatprep.subr.mxu0 0.0
    %437 = vmatpush1.msra.mxu0 %v396
    %438 = vmatprep.subr.mxu0 0.0
    %439 = vmatpush1.msra.mxu0 %v397
    %440 = vmatprep.subr.mxu0 0.0
    %441 = vmatpush1.msra.mxu0 %v398
    %442 = vmatprep.subr.mxu0 0.0
    %443 = vmatpush1.msra.mxu0 %v399
    %444 = vmatprep.subr.mxu0 0.0
    %445 = vmatpush1.msra.mxu0 %v400
    %446 = vmatprep.subr.mxu0 0.0
    %447 = vmatpush1.msra.mxu0 %v401
    %448 = vmatprep.subr.mxu0 0.0
    %449 = vmatpush1.msra.mxu0 %v402
    %450 = vmatprep.subr.mxu0 0.0
    %451 = vmatpush1.msra.mxu0 0.0
    %452 = vmatprep.subr.mxu0 0.0
    %453 = vmatpush1.msra.mxu0 0.0
    %454 = vmatprep.subr.mxu0 0.0
    %455 = vmatpush1.msra.mxu0 0.0
    %456 = vmatprep.subr.mxu0 0.0
    %457 = vmatpush1.msra.mxu0 0.0
    %458 = vmatprep.subr.mxu0 0.0
    %459 = vmatpush1.msra.mxu0 0.0
    %460 = vmatprep.subr.mxu0 0.0
    %461 = vmatpush1.msra.mxu0 0.0
    %462 = vmatprep.subr.mxu0 0.0
    %463 = vmatpush1.msra.mxu0 0.0
    %464 = vmatprep.subr.mxu0 0.0
    %465 = vmatpush1.msra.mxu0 0.0
    %466 = vmatprep.subr.mxu0 0.0
    %467 = vmatpush1.msra.mxu0 0.0
    %468 = vmatprep.subr.mxu0 0.0
    %469 = vmatpush1.msra.mxu0 0.0
    %470 = vmatprep.subr.mxu0 0.0
    %471 = vmatpush1.msra.mxu0 0.0
    %472 = vmatprep.subr.mxu0 0.0
    %473 = vmatpush1.msra.mxu0 0.0
    %474 = vmatprep.subr.mxu0 0.0
    %475 = vmatpush1.msra.mxu0 0.0
    %476 = vmatprep.subr.mxu0 0.0
    %477 = vmatpush1.msra.mxu0 0.0
    %478 = vmatprep.subr.mxu0 0.0
    %479 = vmatpush1.msra.mxu0 0.0
    %480 = vmatprep.subr.mxu0 0.0
    %481 = vmatpush1.msra.mxu0 0.0
    %482 = vmatprep.subr.mxu0 0.0
    %483 = vmatpush1.msra.mxu0 0.0
    %484 = vmatprep.subr.mxu0 0.0
    %485 = vmatpush1.msra.mxu0 0.0
    %486 = vmatprep.subr.mxu0 0.0
    %487 = vmatpush1.msra.mxu0 0.0
    %488 = vmatprep.subr.mxu0 0.0
    %489 = vmatpush1.msra.mxu0 0.0
    %490 = vmatprep.subr.mxu0 0.0
    %491 = vmatpush1.msra.mxu0 0.0
    %492 = vmatprep.subr.mxu0 0.0
    %493 = vmatpush1.msra.mxu0 0.0
    %494 = vmatprep.subr.mxu0 0.0
    %495 = vmatpush1.msra.mxu0 0.0
    %496 = vmatprep.subr.mxu0 0.0
    %497 = vmatpush1.msra.mxu0 0.0
    %498 = vmatprep.mubr.f32.mxu0 0.0
    %499 = vmatmul.mubr.f32.gmra.mrb[0].mxu0 %v411
    %v500 = vpop.f32.mrb[0].mxu0
    %v501 = vadd.f32 %v408, %v500
    %v502 = vpop.f32.mrb[0].mxu0
    %503 = vmatprep.mubr.f32.mxu0 0.0
    %504 = vmatmul.mubr.f32.gmra.mrb[0].mxu0 %v414
    %v505 = vpop.f32.mrb[0].mxu0
    %v506 = vadd.f32 %v408, %v505
    %v507 = vpop.f32.mrb[0].mxu0
    %508 = vmatprep.mubr.f32.mxu0 0.0
    %509 = vmatmul.mubr.f32.gmra.mrb[0].mxu0 %v417
    %v510 = vpop.f32.mrb[0].mxu0
    %v511 = vadd.f32 %v408, %v510
    %v512 = vpop.f32.mrb[0].mxu0
    %513 = vmatprep.mubr.f32.mxu0 0.0
    %514 = vmatmul.mubr.f32.gmra.mrb[0].mxu0 %v420
    %v515 = vpop.f32.mrb[0].mxu0
    %v516 = vadd.f32 %v408, %v515
    %v517 = vpop.f32.mrb[0].mxu0
    %518 = vmatprep.mubr.f32.mxu0 0.0
    %519 = vmatmul.mubr.f32.gmra.mrb[0].mxu0 %v423
    %v520 = vpop.f32.mrb[0].mxu0
    %v521 = vadd.f32 %v408, %v520
    %v522 = vpop.f32.mrb[0].mxu0
    %523 = vmatprep.mubr.f32.mxu0 0.0
    %524 = vmatmul.mubr.f32.gmra.mrb[0].mxu0 %v426
    %v525 = vpop.f32.mrb[0].mxu0
    %v526 = vadd.f32 %v408, %v525
    %v527 = vpop.f32.mrb[0].mxu0
    %528 = vmatprep.mubr.f32.mxu0 0.0
    %529 = vmatmul.mubr.f32.gmra.mrb[0].mxu0 %v429
    %v530 = vpop.f32.mrb[0].mxu0
    %v531 = vadd.f32 %v408, %v530
    %v532 = vpop.f32.mrb[0].mxu0
    %533 = vmatprep.mubr.f32.mxu0 0.0
    %534 = vmatmul.mubr.f32.gmra.mrb[0].mxu0 %v432
    %v535 = vpop.f32.mrb[0].mxu0
    %v536 = vadd.f32 %v408, %v535
    %v537 = vpop.f32.mrb[0].mxu0
    %538 = vdwg.mxu0
    %v539 = vmax.f32 %v501, 0.0
    %v540 = vmax.f32 %v506, 0.0
    %v541 = vmax.f32 %v511, 0.0
    %v542 = vmax.f32 %v516, 0.0
    %v543 = vmax.f32 %v521, 0.0
    %v544 = vmax.f32 %v526, 0.0
    %v545 = vmax.f32 %v531, 0.0
    %v546 = vmax.f32 %v536, 0.0
    %547 = vrot.lane.b32.xlu0 %v357, 64
    %v548 = vpop.permute.xlu0 %547
    %549 = vrot.lane.b32.xlu0 %v362, 64
    %v550 = vpop.permute.xlu0 %549
    %551 = vrot.lane.b32.xlu0 %v367, 64
    %v552 = vpop.permute.xlu0 %551
    %553 = vrot.lane.b32.xlu0 %v372, 64
    %v554 = vpop.permute.xlu0 %553
    %555 = vrot.lane.b32.xlu0 %v377, 64
    %v556 = vpop.permute.xlu0 %555
    %557 = vrot.lane.b32.xlu0 %v382, 64
    %v558 = vpop.permute.xlu0 %557
    %559 = vrot.lane.b32.xlu0 %v387, 64
    %v560 = vpop.permute.xlu0 %559
    %561 = vrot.lane.b32.xlu0 %v392, 64
    %v562 = vpop.permute.xlu0 %561
    %v571 = vsel %vm265, %v539, %v548
    %v572 = vsel %vm265, %v540, %v550
    %v573 = vsel %vm265, %v541, %v552
    %v574 = vsel %vm265, %v542, %v554
    %v575 = vsel %vm265, %v543, %v556
    %v576 = vsel %vm265, %v544, %v558
    %v577 = vsel %vm265, %v545, %v560
    %v578 = vsel %vm265, %v546, %v562
    %v579 = vld [vmem:[#allocation5] sm:$0xff]
    %v580 = vld [vmem:[#allocation5 + $0x8] sm:$0xff]
    %v581 = vld [vmem:[#allocation5 + $0x10] sm:$0xff]
    %v582 = vld [vmem:[#allocation5 + $0x18] sm:$0xff]
    %v583 = vld [vmem:[#allocation5 + $0x20] sm:$0xff]
    %v584 = vld [vmem:[#allocation5 + $0x28] sm:$0xff]
    %v585 = vld [vmem:[#allocation5 + $0x30] sm:$0xff]
    %v586 = vld [vmem:[#allocation5 + $0x38] sm:$0xff]
    %v587 = vld [vmem:[#allocation5 + $0x40] sm:$0xff]
    %v588 = vld [vmem:[#allocation5 + $0x48] sm:$0xff]
    %v589 = vld [vmem:[#allocation5 + $0x50] sm:$0xff]
    %v590 = vld [vmem:[#allocation5 + $0x58] sm:$0xff]
    %v591 = vld [vmem:[#allocation5 + $0x60] sm:$0xff]
    %v592 = vld [vmem:[#allocation5 + $0x68] sm:$0xff]
    %v593 = vld [vmem:[#allocation5 + $0x70] sm:$0xff]
    %v594 = vld [vmem:[#allocation5 + $0x78] sm:$0xff]
    %v595 = vld [vmem:[#allocation5 + $0x80] sm:$0xff]
    %v596 = vld [vmem:[#allocation5 + $0x88] sm:$0xff]
    %v597 = vld [vmem:[#allocation5 + $0x90] sm:$0xff]
    %v598 = vld [vmem:[#allocation5 + $0x98] sm:$0xff]
    %v599 = vld [vmem:[#allocation5 + $0xa0] sm:$0xff]
    %v600 = vld [vmem:[#allocation5 + $0xa8] sm:$0xff]
    %v601 = vld [vmem:[#allocation5 + $0xb0] sm:$0xff]
    %v602 = vld [vmem:[#allocation5 + $0xb8] sm:$0xff]
    %v603 = vld [vmem:[#allocation5 + $0xc0] sm:$0xff]
    %v604 = vld [vmem:[#allocation5 + $0xc8] sm:$0xff]
    %v605 = vld [vmem:[#allocation5 + $0xd0] sm:$0xff]
    %v606 = vld [vmem:[#allocation5 + $0xd8] sm:$0xff]
    %v607 = vld [vmem:[#allocation5 + $0xe0] sm:$0xff]
    %v608 = vld [vmem:[#allocation5 + $0xe8] sm:$0xff]
    %v609 = vld [vmem:[#allocation5 + $0xf0] sm:$0xff]
    %v610 = vld [vmem:[#allocation5 + $0xf8] sm:$0xff]
    %v611 = vld [vmem:[%s8] sm:$0x3]
    %v613 = vlaneseq
    %v614 = vshrl.u32 %v613, 7
    %v615 = vsub.s32 0, %v614
    %v616 = vrot.slane %v611, %v615
    %v617 = vlaneseq
    %v618 = vshrl.u32 %v617, 7
    %v619 = vsub.s32 1, %v618
    %v620 = vrot.slane %v611, %v619
    %623 = vmatprep.subr.mxu0 %v580
    %624 = vmatpush1.msra.mxu0 %v579
    %625 = vmatprep.subr.mxu0 %v582
    %626 = vmatpush1.msra.mxu0 %v581
    %627 = vmatprep.subr.mxu0 %v584
    %628 = vmatpush1.msra.mxu0 %v583
    %629 = vmatprep.subr.mxu0 %v586
    %630 = vmatpush1.msra.mxu0 %v585
    %631 = vmatprep.subr.mxu0 %v588
    %632 = vmatpush1.msra.mxu0 %v587
    %633 = vmatprep.subr.mxu0 %v590
    %634 = vmatpush1.msra.mxu0 %v589
    %635 = vmatprep.subr.mxu0 %v592
    %636 = vmatpush1.msra.mxu0 %v591
    %637 = vmatprep.subr.mxu0 %v594
    %638 = vmatpush1.msra.mxu0 %v593
    %639 = vmatprep.subr.mxu0 %v596
    %640 = vmatpush1.msra.mxu0 %v595
    %641 = vmatprep.subr.mxu0 %v598
    %642 = vmatpush1.msra.mxu0 %v597
    %643 = vmatprep.subr.mxu0 %v600
    %644 = vmatpush1.msra.mxu0 %v599
    %645 = vmatprep.subr.mxu0 %v602
    %646 = vmatpush1.msra.mxu0 %v601
    %647 = vmatprep.subr.mxu0 %v604
    %648 = vmatpush1.msra.mxu0 %v603
    %649 = vmatprep.subr.mxu0 %v606
    %650 = vmatpush1.msra.mxu0 %v605
    %651 = vmatprep.subr.mxu0 %v608
    %652 = vmatpush1.msra.mxu0 %v607
    %653 = vmatprep.subr.mxu0 %v610
    %654 = vmatpush1.msra.mxu0 %v609
    %655 = vmatprep.subr.mxu0 0.0
    %656 = vmatpush1.msra.mxu0 0.0
    %657 = vmatprep.subr.mxu0 0.0
    %658 = vmatpush1.msra.mxu0 0.0
    %659 = vmatprep.subr.mxu0 0.0
    %660 = vmatpush1.msra.mxu0 0.0
    %661 = vmatprep.subr.mxu0 0.0
    %662 = vmatpush1.msra.mxu0 0.0
    %663 = vmatprep.subr.mxu0 0.0
    %664 = vmatpush1.msra.mxu0 0.0
    %665 = vmatprep.subr.mxu0 0.0
    %666 = vmatpush1.msra.mxu0 0.0
    %667 = vmatprep.subr.mxu0 0.0
    %668 = vmatpush1.msra.mxu0 0.0
    %669 = vmatprep.subr.mxu0 0.0
    %670 = vmatpush1.msra.mxu0 0.0
    %671 = vmatprep.subr.mxu0 0.0
    %672 = vmatpush1.msra.mxu0 0.0
    %673 = vmatprep.subr.mxu0 0.0
    %674 = vmatpush1.msra.mxu0 0.0
    %675 = vmatprep.subr.mxu0 0.0
    %676 = vmatpush1.msra.mxu0 0.0
    %677 = vmatprep.subr.mxu0 0.0
    %678 = vmatpush1.msra.mxu0 0.0
    %679 = vmatprep.subr.mxu0 0.0
    %680 = vmatpush1.msra.mxu0 0.0
    %681 = vmatprep.subr.mxu0 0.0
    %682 = vmatpush1.msra.mxu0 0.0
    %683 = vmatprep.subr.mxu0 0.0
    %684 = vmatpush1.msra.mxu0 0.0
    %685 = vmatprep.subr.mxu0 0.0
    %686 = vmatpush1.msra.mxu0 0.0
    %687 = vmatprep.mubr.f32.mxu0 0.0
    %688 = vmatmul.mubr.f32.gmra.mrb[0].mxu0 %v571
    %v689 = vpop.f32.mrb[0].mxu0
    %v690 = vadd.f32 %v616, %v689
    %v691 = vpop.f32.mrb[0].mxu0
    %v692 = vadd.f32 %v620, %v691
    %693 = vmatprep.mubr.f32.mxu0 0.0
    %694 = vmatmul.mubr.f32.gmra.mrb[0].mxu0 %v572
    %v695 = vpop.f32.mrb[0].mxu0
    %v696 = vadd.f32 %v616, %v695
    %v697 = vpop.f32.mrb[0].mxu0
    %v698 = vadd.f32 %v620, %v697
    %699 = vmatprep.mubr.f32.mxu0 0.0
    %700 = vmatmul.mubr.f32.gmra.mrb[0].mxu0 %v573
    %v701 = vpop.f32.mrb[0].mxu0
    %v702 = vadd.f32 %v616, %v701
    %v703 = vpop.f32.mrb[0].mxu0
    %v704 = vadd.f32 %v620, %v703
    %705 = vmatprep.mubr.f32.mxu0 0.0
    %706 = vmatmul.mubr.f32.gmra.mrb[0].mxu0 %v574
    %v707 = vpop.f32.mrb[0].mxu0
    %v708 = vadd.f32 %v616, %v707
    %v709 = vpop.f32.mrb[0].mxu0
    %v710 = vadd.f32 %v620, %v709
    %711 = vmatprep.mubr.f32.mxu0 0.0
    %712 = vmatmul.mubr.f32.gmra.mrb[0].mxu0 %v575
    %v713 = vpop.f32.mrb[0].mxu0
    %v714 = vadd.f32 %v616, %v713
    %v715 = vpop.f32.mrb[0].mxu0
    %v716 = vadd.f32 %v620, %v715
    %717 = vmatprep.mubr.f32.mxu0 0.0
    %718 = vmatmul.mubr.f32.gmra.mrb[0].mxu0 %v576
    %v719 = vpop.f32.mrb[0].mxu0
    %v720 = vadd.f32 %v616, %v719
    %v721 = vpop.f32.mrb[0].mxu0
    %v722 = vadd.f32 %v620, %v721
    %723 = vmatprep.mubr.f32.mxu0 0.0
    %724 = vmatmul.mubr.f32.gmra.mrb[0].mxu0 %v577
    %v725 = vpop.f32.mrb[0].mxu0
    %v726 = vadd.f32 %v616, %v725
    %v727 = vpop.f32.mrb[0].mxu0
    %v728 = vadd.f32 %v620, %v727
    %729 = vmatprep.mubr.f32.mxu0 0.0
    %730 = vmatmul.mubr.f32.gmra.mrb[0].mxu0 %v578
    %v731 = vpop.f32.mrb[0].mxu0
    %v732 = vadd.f32 %v616, %v731
    %v733 = vpop.f32.mrb[0].mxu0
    %v734 = vadd.f32 %v620, %v733
    %735 = vdwg.mxu0
    %736 = vst [vmem:[#allocation7] sm:$0xff] %v690
    %737 = vst [vmem:[#allocation7 + $0x8] sm:$0xff] %v692
    %738 = vst [vmem:[#allocation7 + $0x10] sm:$0xff] %v696
    %739 = vst [vmem:[#allocation7 + $0x18] sm:$0xff] %v698
    %740 = vst [vmem:[#allocation7 + $0x20] sm:$0xff] %v702
    %741 = vst [vmem:[#allocation7 + $0x28] sm:$0xff] %v704
    %742 = vst [vmem:[#allocation7 + $0x30] sm:$0xff] %v708
    %743 = vst [vmem:[#allocation7 + $0x38] sm:$0xff] %v710
    %744 = vst [vmem:[#allocation7 + $0x40] sm:$0xff] %v714
    %745 = vst [vmem:[#allocation7 + $0x48] sm:$0xff] %v716
    %746 = vst [vmem:[#allocation7 + $0x50] sm:$0xff] %v720
    %747 = vst [vmem:[#allocation7 + $0x58] sm:$0xff] %v722
    %748 = vst [vmem:[#allocation7 + $0x60] sm:$0xff] %v726
    %749 = vst [vmem:[#allocation7 + $0x68] sm:$0xff] %v728
    %750 = vst [vmem:[#allocation7 + $0x70] sm:$0xff] %v732
    %751 = vst [vmem:[#allocation7 + $0x78] sm:$0xff] %v734
    // Predicated region
    $region46: #{tpu_custom_call.1} parent=1 // pred_check
      _
    $region47: #{tpu_custom_call.1} parent=1 // pred_check_branch
      %753 = sbr.rel (0) target = $region49
    $region48: #{tpu_custom_call.1} parent=1 // pred_region
      %s755 = ssub.s32 2048, 2048
      %756 = vsyncadd [#allocation4], %s755
      %s757 = sshll.u32 [#allocation7], 4
      %s758 = int_to_ptr.vmem [resolvable:$true] %s757
      %763 = dma.vmem_to_hbm [thread:$0]  %s758, 2048, %s9, [#allocation4], 256, 256, 16
    $region49: #{tpu_custom_call.1} parent=1 // pred_fallthru
      _
    // Predicated region
    $region50: #{tpu_custom_call.1} parent=1 // pred_check
      _
    $region51: #{tpu_custom_call.1} parent=1 // pred_check_branch
      %765 = sbr.rel (0) target = $region53
    $region52: #{tpu_custom_call.1} parent=1 // pred_region
      %766 = dma.done [#allocation4], 2048
    $region53: #{tpu_custom_call.1} parent=1 // pred_fallthru
      _
    %767 = vsyncpa [#allocation3], 1
    %768 = vsyncpa [#allocation6], 1
    %769 = vsyncpa [#allocation4], 1

</llo_original>
